<compile_context>
chip_gen: v6e
topology: v6e:2x2x1
jax: 0.10.0
libtpu: 0.0.40
codegen_flags: <defaults>
</compile_context>

<pallas_src>
import jax
import jax.numpy as jnp
from jax.experimental import pallas as pl
from jax.experimental.pallas import tpu as pltpu


def _make_gate_kernel(D1, D2, D3):

    def gate_kernel(scalars_ref, x_ref, wg_ref, w3_ref, vec_ref, out_ref):
        # --- true scalars via the cheap SMEM scalar path --------------------
        b1 = scalars_ref[0]
        b2 = scalars_ref[1]
        beta = scalars_ref[2]

        x = x_ref[...]                                     # (B, D1+D2+D3) f32
        x1 = x[:, :D1]                                     # lane-0 static slice

        # --- both gating logits in one small MXU matmul ---------------------
        logits = jnp.dot(x, wg_ref[...],
                         preferred_element_type=jnp.float32)       # (B, 2)
        w2 = jax.nn.sigmoid(logits[:, 0:1] + b1)                   # (B, 1)
        w3 = jax.nn.sigmoid(logits[:, 1:2] + b2)                   # (B, 1)

        # --- per-lane gate scale via iota masks (no lane concat) ------------
        # x1 lanes -> 0, x2 lanes -> w2, x3 lanes -> w3.
        lane = jax.lax.broadcasted_iota(jnp.int32, x.shape, 1)
        scale = jnp.where(lane < D1, 0.0,
                          jnp.where(lane < D1 + D2, w2, w3))       # (B, Dtot)

        # --- fc3 on the gated packed slab (w3_ref x1-rows are zero) ---------
        b3 = vec_ref[0:1, :D1]                                     # (1, D1)
        adjust = jnp.dot(x * scale, w3_ref[...],
                         preferred_element_type=jnp.float32) + b3  # (B, D1)

        # --- alpha = min(||x1||_F / ||adjust||_F * beta, 1), divide-free ----
        sum1 = jnp.sum(x1 * x1)
        suma = jnp.sum(adjust * adjust)
        alpha = jnp.minimum(beta * jnp.sqrt(sum1) * jax.lax.rsqrt(suma), 1.0)

        out = x1 + alpha * adjust

        # --- LayerNorm over features (eps=1e-5, biased variance) ------------
        mean = jnp.mean(out, axis=-1, keepdims=True)
        cent = out - mean
        var = jnp.mean(cent * cent, axis=-1, keepdims=True)
        gamma = vec_ref[1:2, :D1]                                  # (1, D1)
        lnb = vec_ref[2:3, :D1]                                    # (1, D1)
        out_ref[...] = cent * jax.lax.rsqrt(var + 1e-5) * gamma + lnb
        # TODO(synk): nn.Dropout(p=0) is an identity; non-zero dropout would
        # need pltpu.prng_seed / pltpu.prng_random_bits masking here.

    return gate_kernel


def pack_gate_params(p, D1, D2, D3):
    """One-time host-side packing of the 12 tiny parameter tensors into 4."""
    f32 = jnp.float32
    # True scalars -> SMEM.
    scalars = jnp.stack(
        [p["b1"].reshape(()), p["b2"].reshape(()), p["beta"].reshape(())]
    ).astype(f32)                                              # (3,)

    # Gate weight (Dtot, 2): col0 = [w1a; w1b; 0], col1 = [w2a; 0; w2b].
    col0 = jnp.concatenate(
        [p["w1a"], p["w1b"], jnp.zeros((1, D3), f32)], axis=-1)   # (1, Dtot)
    col1 = jnp.concatenate(
        [p["w2a"], jnp.zeros((1, D2), f32), p["w2b"]], axis=-1)   # (1, Dtot)
    w_gate = jnp.concatenate([col0, col1], axis=0).T.astype(f32)  # (Dtot, 2)

    # fc3 weight (Dtot, D1) with zero rows for the x1 lanes of the packed x.
    w3_packed = jnp.concatenate(
        [jnp.zeros((D1, D1), f32), p["w3a"], p["w3b"]], axis=0
    ).astype(f32)                                              # (Dtot, D1)

    # Row-vector slab: one lane-0-aligned (padded-to-128) row per parameter.
    pad_w = max(128, ((D1 + 127) // 128) * 128)

    def pad_row(v):
        return jnp.pad(v.astype(f32), ((0, 0), (0, pad_w - D1)))

    vec_slab = jnp.concatenate(
        [pad_row(p["b3"]), pad_row(p["gamma"]), pad_row(p["ln_beta"])], axis=0
    )                                                          # (3, pad_w)

    return {"scalars": scalars, "w_gate": w_gate,
            "w3_packed": w3_packed, "vec_slab": vec_slab}


def gate_forward(inp1, inp2, inp3, packed):
    B, D1 = inp1.shape
    D2 = inp2.shape[-1]
    D3 = inp3.shape[-1]
    # One packed activation operand -> one HBM->VMEM DMA, no in-kernel concat.
    x_packed = jnp.concatenate([inp1, inp2, inp3], axis=-1).astype(jnp.float32)

    vmem = pl.BlockSpec(memory_space=pltpu.MemorySpace.VMEM)
    smem = pl.BlockSpec(memory_space=pltpu.MemorySpace.SMEM)
    out = pl.pallas_call(
        _make_gate_kernel(D1, D2, D3),
        out_shape=jax.ShapeDtypeStruct((B, D1), jnp.float32),
        in_specs=[smem, vmem, vmem, vmem, vmem],
        out_specs=vmem,
    )(packed["scalars"], x_packed, packed["w_gate"],
      packed["w3_packed"], packed["vec_slab"])
    return jnp.squeeze(out)   # matches torch .squeeze(); no-op for B, D1 > 1


def gate_reference(inp1, inp2, inp3, p):
    """Plain-JAX reference mirroring the PyTorch forward."""
    w2 = jax.nn.sigmoid(
        jnp.concatenate([inp1, inp2], -1)
        @ jnp.concatenate([p["w1a"], p["w1b"]], -1).T + p["b1"][0, 0]
    )
    w3 = jax.nn.sigmoid(
        jnp.concatenate([inp1, inp3], -1)
        @ jnp.concatenate([p["w2a"], p["w2b"]], -1).T + p["b2"][0, 0]
    )
    adjust = (
        jnp.concatenate([w2 * inp2, w3 * inp3], -1)
        @ jnp.concatenate([p["w3a"], p["w3b"]], 0) + p["b3"]
    )
    alpha = jnp.minimum(
        jnp.linalg.norm(inp1) / jnp.linalg.norm(adjust) * p["beta"][0, 0], 1.0
    )
    out = inp1 + alpha * adjust
    mean = out.mean(-1, keepdims=True)
    var = ((out - mean) ** 2).mean(-1, keepdims=True)
    normed = (out - mean) / jnp.sqrt(var + 1e-5)
    return jnp.squeeze(normed * p["gamma"] + p["ln_beta"])


if __name__ == "__main__":
    B, D1, D2, D3 = 8, 32, 32, 32

    key = jax.random.PRNGKey(0)
    ks = jax.random.split(key, 12)

    inp1 = jax.random.normal(ks[0], (B, D1), jnp.float32)
    inp2 = jax.random.normal(ks[1], (B, D2), jnp.float32)
    inp3 = jax.random.normal(ks[2], (B, D3), jnp.float32)

    # Deterministic parameter init (shapes match the nn.Module).
    params = {
        # fc1: Linear(D1 + D2, 1) split into D1 part and D2 part, stored (1, D)
        "w1a": 0.05 * jax.random.normal(ks[3], (1, D1), jnp.float32),
        "w1b": 0.05 * jax.random.normal(ks[4], (1, D2), jnp.float32),
        "b1": jnp.zeros((1, 1), jnp.float32),
        # fc2: Linear(D1 + D3, 1)
        "w2a": 0.05 * jax.random.normal(ks[5], (1, D1), jnp.float32),
        "w2b": 0.05 * jax.random.normal(ks[6], (1, D3), jnp.float32),
        "b2": jnp.zeros((1, 1), jnp.float32),
        # fc3: Linear(D2 + D3, D1) split; stored as (in, out) for x @ W
        "w3a": 0.05 * jax.random.normal(ks[7], (D2, D1), jnp.float32),
        "w3b": 0.05 * jax.random.normal(ks[8], (D3, D1), jnp.float32),
        "b3": 0.01 * jax.random.normal(ks[9], (1, D1), jnp.float32),
        # beta ~ randn((1,))
        "beta": jax.random.normal(ks[10], (1, 1), jnp.float32),
        # LayerNorm affine params
        "gamma": jnp.ones((1, D1), jnp.float32),
        "ln_beta": jnp.zeros((1, D1), jnp.float32),
    }

    packed = pack_gate_params(params, D1, D2, D3)   # one-time host-side packing

    out = gate_forward(inp1, inp2, inp3, packed)
    out = jax.block_until_ready(out)

    ref = gate_reference(inp1, inp2, inp3, params)
    assert out.shape == ref.shape == (B, D1)
    assert jnp.allclose(out, ref, rtol=1e-4, atol=1e-4), "mismatch vs reference"

    print("KERNEL_OK")
</pallas_src>

<mosaic_0001>
module attributes {stable_mosaic.version = 11 : i64} {
  func.func @gate_kernel(%arg0: memref<3xf32, #tpu.memory_space<smem>>, %arg1: memref<8x96xf32, #tpu.memory_space<vmem>>, %arg2: memref<96x2xf32, #tpu.memory_space<vmem>>, %arg3: memref<96x32xf32, #tpu.memory_space<vmem>>, %arg4: memref<3x128xf32, #tpu.memory_space<vmem>>, %arg5: memref<8x32xf32, #tpu.memory_space<vmem>>) attributes {dimension_semantics = [], scalar_prefetch = 0 : i64, scratch_operands = 0 : i64, tpu.core_type = #tpu.core_type<tc>} {
    %c0 = arith.constant 0 : index
    %0 = memref.load %arg0[%c0] : memref<3xf32, #tpu.memory_space<smem>>
    %c1 = arith.constant 1 : index
    %1 = memref.load %arg0[%c1] : memref<3xf32, #tpu.memory_space<smem>>
    %c2 = arith.constant 2 : index
    %2 = memref.load %arg0[%c2] : memref<3xf32, #tpu.memory_space<smem>>
    %c0_0 = arith.constant 0 : index
    %c0_1 = arith.constant 0 : index
    %3 = vector.load %arg1[%c0_0, %c0_1] : memref<8x96xf32, #tpu.memory_space<vmem>>, vector<8x96xf32>
    %4 = vector.extract_strided_slice %3 {offsets = [0, 0], sizes = [8, 32], strides = [1, 1]} : vector<8x96xf32> to vector<8x32xf32>
    %c0_2 = arith.constant 0 : index
    %c0_3 = arith.constant 0 : index
    %5 = vector.load %arg2[%c0_2, %c0_3] : memref<96x2xf32, #tpu.memory_space<vmem>>, vector<96x2xf32>
    %cst = arith.constant dense<0.000000e+00> : vector<8x2xf32>
    %6 = tpu.matmul %3, %5, %cst {dimension_numbers = #tpu.dot_dimension_numbers<[1], [0], [0], [1], [0, 0, 1, 1], [], []>} : vector<8x96xf32>, vector<96x2xf32>, vector<8x2xf32> -> vector<8x2xf32>
    %7 = vector.extract_strided_slice %6 {offsets = [0, 0], sizes = [8, 1], strides = [1, 1]} : vector<8x2xf32> to vector<8x1xf32>
    %8 = vector.broadcast %0 : f32 to vector<8x1xf32>
    %9 = arith.addf %7, %8 : vector<8x1xf32>
    %10 = arith.negf %9 : vector<8x1xf32>
    %11 = math.exp %10 : vector<8x1xf32>
    %cst_4 = arith.constant 1.000000e+00 : f32
    %12 = vector.broadcast %cst_4 : f32 to vector<8x1xf32>
    %13 = arith.addf %12, %11 : vector<8x1xf32>
    %14 = arith.divf %12, %13 : vector<8x1xf32>
    %15 = vector.extract_strided_slice %6 {offsets = [0, 1], sizes = [8, 1], strides = [1, 1]} : vector<8x2xf32> to vector<8x1xf32>
    %16 = vector.broadcast %1 : f32 to vector<8x1xf32>
    %17 = arith.addf %15, %16 : vector<8x1xf32>
    %18 = arith.negf %17 : vector<8x1xf32>
    %19 = math.exp %18 : vector<8x1xf32>
    %cst_5 = arith.constant 1.000000e+00 : f32
    %20 = vector.broadcast %cst_5 : f32 to vector<8x1xf32>
    %21 = arith.addf %20, %19 : vector<8x1xf32>
    %22 = arith.divf %20, %21 : vector<8x1xf32>
    %23 = tpu.iota {dimensions = array<i32: 1>} : vector<8x96xi32>
    %c32_i32 = arith.constant 32 : i32
    %24 = vector.broadcast %c32_i32 : i32 to vector<8x96xi32>
    %25 = arith.cmpi slt, %23, %24 : vector<8x96xi32>
    %c64_i32 = arith.constant 64 : i32
    %26 = vector.broadcast %c64_i32 : i32 to vector<8x96xi32>
    %27 = arith.cmpi slt, %23, %26 : vector<8x96xi32>
    %28 = vector.shape_cast %14 : vector<8x1xf32> to vector<8x1xf32>
    %29 = vector.broadcast %28 : vector<8x1xf32> to vector<8x96xf32>
    %30 = vector.shape_cast %22 : vector<8x1xf32> to vector<8x1xf32>
    %31 = vector.broadcast %30 : vector<8x1xf32> to vector<8x96xf32>
    %32 = arith.select %27, %29, %31 : vector<8x96xi1>, vector<8x96xf32>
    %cst_6 = arith.constant 0.000000e+00 : f32
    %33 = vector.broadcast %cst_6 : f32 to vector<8x96xf32>
    %34 = arith.select %25, %33, %32 : vector<8x96xi1>, vector<8x96xf32>
    %c0_7 = arith.constant 0 : index
    %c0_8 = arith.constant 0 : index
    %35 = vector.load %arg4[%c0_7, %c0_8] : memref<3x128xf32, #tpu.memory_space<vmem>>, vector<1x32xf32>
    %36 = arith.mulf %3, %34 : vector<8x96xf32>
    %c0_9 = arith.constant 0 : index
    %c0_10 = arith.constant 0 : index
    %37 = vector.load %arg3[%c0_9, %c0_10] : memref<96x32xf32, #tpu.memory_space<vmem>>, vector<96x32xf32>
    %cst_11 = arith.constant dense<0.000000e+00> : vector<8x32xf32>
    %38 = tpu.matmul %36, %37, %cst_11 {dimension_numbers = #tpu.dot_dimension_numbers<[1], [0], [0], [1], [0, 0, 1, 1], [], []>} : vector<8x96xf32>, vector<96x32xf32>, vector<8x32xf32> -> vector<8x32xf32>
    %39 = vector.broadcast %35 : vector<1x32xf32> to vector<8x32xf32>
    %40 = arith.addf %38, %39 : vector<8x32xf32>
    %41 = arith.mulf %4, %4 : vector<8x32xf32>
    %42 = vector.shape_cast %41 : vector<8x32xf32> to vector<1x8x32xf32>
    %cst_12 = arith.constant dense<0.000000e+00> : vector<1xf32>
    %43 = vector.multi_reduction <add>, %42, %cst_12 [1, 2] : vector<1x8x32xf32> to vector<1xf32>
    %44 = vector.shape_cast %43 : vector<1xf32> to vector<1x1x1xf32>
    %45 = vector.extract %44[0, 0, 0] : f32 from vector<1x1x1xf32>
    %46 = arith.mulf %40, %40 : vector<8x32xf32>
    %47 = vector.shape_cast %46 : vector<8x32xf32> to vector<1x8x32xf32>
    %cst_13 = arith.constant dense<0.000000e+00> : vector<1xf32>
    %48 = vector.multi_reduction <add>, %47, %cst_13 [1, 2] : vector<1x8x32xf32> to vector<1xf32>
    %49 = vector.shape_cast %48 : vector<1xf32> to vector<1x1x1xf32>
    %50 = vector.extract %49[0, 0, 0] : f32 from vector<1x1x1xf32>
    %51 = math.sqrt %45 : f32
    %52 = arith.mulf %2, %51 : f32
    %53 = math.rsqrt %50 : f32
    %54 = arith.mulf %52, %53 : f32
    %cst_14 = arith.constant 1.000000e+00 : f32
    %55 = arith.minimumf %54, %cst_14 : f32
    %56 = vector.broadcast %55 : f32 to vector<8x32xf32>
    %57 = arith.mulf %56, %40 : vector<8x32xf32>
    %58 = arith.addf %4, %57 : vector<8x32xf32>
    %cst_15 = arith.constant dense<0.000000e+00> : vector<8xf32>
    %59 = vector.multi_reduction <add>, %58, %cst_15 [1] : vector<8x32xf32> to vector<8xf32>
    %60 = vector.shape_cast %59 : vector<8xf32> to vector<8x1xf32>
    %cst_16 = arith.constant 3.200000e+01 : f32
    %61 = vector.broadcast %cst_16 : f32 to vector<8x1xf32>
    %62 = arith.divf %60, %61 : vector<8x1xf32>
    %63 = vector.broadcast %62 : vector<8x1xf32> to vector<8x32xf32>
    %64 = arith.subf %58, %63 : vector<8x32xf32>
    %65 = arith.mulf %64, %64 : vector<8x32xf32>
    %cst_17 = arith.constant dense<0.000000e+00> : vector<8xf32>
    %66 = vector.multi_reduction <add>, %65, %cst_17 [1] : vector<8x32xf32> to vector<8xf32>
    %67 = vector.shape_cast %66 : vector<8xf32> to vector<8x1xf32>
    %cst_18 = arith.constant 3.200000e+01 : f32
    %68 = vector.broadcast %cst_18 : f32 to vector<8x1xf32>
    %69 = arith.divf %67, %68 : vector<8x1xf32>
    %c1_19 = arith.constant 1 : index
    %c0_20 = arith.constant 0 : index
    %70 = vector.load %arg4[%c1_19, %c0_20] : memref<3x128xf32, #tpu.memory_space<vmem>>, vector<1x32xf32>
    %c2_21 = arith.constant 2 : index
    %c0_22 = arith.constant 0 : index
    %71 = vector.load %arg4[%c2_21, %c0_22] : memref<3x128xf32, #tpu.memory_space<vmem>>, vector<1x32xf32>
    %cst_23 = arith.constant 9.99999974E-6 : f32
    %72 = vector.broadcast %cst_23 : f32 to vector<8x1xf32>
    %73 = arith.addf %69, %72 : vector<8x1xf32>
    %74 = math.rsqrt %73 : vector<8x1xf32>
    %75 = vector.broadcast %74 : vector<8x1xf32> to vector<8x32xf32>
    %76 = arith.mulf %64, %75 : vector<8x32xf32>
    %77 = vector.broadcast %70 : vector<1x32xf32> to vector<8x32xf32>
    %78 = arith.mulf %76, %77 : vector<8x32xf32>
    %79 = vector.broadcast %71 : vector<1x32xf32> to vector<8x32xf32>
    %80 = arith.addf %78, %79 : vector<8x32xf32>
    %c0_24 = arith.constant 0 : index
    %c0_25 = arith.constant 0 : index
    %81 = vector.load %arg5[%c0_24, %c0_25] : memref<8x32xf32, #tpu.memory_space<vmem>>, vector<8x32xf32>
    tpu.vector_store %arg5[%c0_24, %c0_25], %80 {strides = array<i32>} : memref<8x32xf32, #tpu.memory_space<vmem>>, vector<8x32xf32>,
    return
  }
}

</mosaic_0001>

<llo_original>
// kernel: tpu_custom_call.1
$region0: #{tpu_custom_call.1}
  #allocation0 [shape = 'u32[]', space=smem, size = 0x4, offset = 0x4, fixed_abs, tag = 'smem constant byte address 0x4 - core index']
  #allocation1 [shape = 'u32[144,128]{1,0:T(1,128)}', space=vmem, size = 0x12000, scoped, tag = 'internal scratch']
  %s0 = inlined_call_operand.vmem [shape: f32[3], index: 0, kind: input, shape index: {}]
  %s1 = inlined_call_operand.vmem [shape: f32[8,96], index: 1, kind: input, shape index: {}]
  %s2 = inlined_call_operand.vmem [shape: f32[96,2], index: 2, kind: input, shape index: {}]
  %s3 = inlined_call_operand.vmem [shape: f32[96,32], index: 3, kind: input, shape index: {}]
  %s4 = inlined_call_operand.vmem [shape: f32[3,128], index: 4, kind: input, shape index: {}]
  %s5 = inlined_call_operand.hbm [shape: f32[8,32], index: 5, kind: output, shape index: {}]
  %s6 = sld [smem:[#allocation0]]
  $region34: #{tpu_custom_call.1} parent=0
    _
  %s8 = ssub.s32 1, %s6
  %s9 = scalar_select 0, %s8, %s6
  $region1: #{tpu_custom_call.1} parent=0
    #allocation2 [shape = 'u8[512]{0}', space=smem, size = 0x200, scoped, tag = 'input window, operand 0, single buffered']
    #allocation3 [shape = 's32[1]{0}', space=sflag, size = 0x4, scoped, tag = 'scoped memory for tpu_custom_call.1']
    #allocation4 [shape = 's32[1]{0}', space=sflag, size = 0x4, scoped, tag = 'scoped memory for tpu_custom_call.1']
    #allocation5 [shape = 'u8[4096]{0}', space=vmem, size = 0x1000, scoped, tag = 'output window, operand 0, single buffered']
    %10 = vsyncpa [#allocation4], 0
    %11 = vsyncpa [#allocation3], 0
    // Predicated region
    $region2: #{tpu_custom_call.1} parent=1 // pred_check
      _
    $region3: #{tpu_custom_call.1} parent=1 // pred_check_branch
      %13 = sbr.rel (0) target = $region5
    $region4: #{tpu_custom_call.1} parent=1 // pred_region
      %s15 = ssub.s32 16, 16
      %16 = vsyncadd [#allocation4], %s15
      %s18 = sshll.u32 %s0, 4
      %s19 = int_to_ptr.vmem [resolvable:$true] %s18
      %21 = dma.vmem_to_smem %s19, 16, [#allocation2], [#allocation4]
    $region5: #{tpu_custom_call.1} parent=1 // pred_fallthru
      _
    // Predicated region
    $region6: #{tpu_custom_call.1} parent=1 // pred_check
      _
    $region7: #{tpu_custom_call.1} parent=1 // pred_check_branch
      %23 = sbr.rel (0) target = $region9
    $region8: #{tpu_custom_call.1} parent=1 // pred_region
      _
    $region9: #{tpu_custom_call.1} parent=1 // pred_fallthru
      _
    // Predicated region
    $region10: #{tpu_custom_call.1} parent=1 // pred_check
      _
    $region11: #{tpu_custom_call.1} parent=1 // pred_check_branch
      %25 = sbr.rel (0) target = $region13
    $region12: #{tpu_custom_call.1} parent=1 // pred_region
      _
    $region13: #{tpu_custom_call.1} parent=1 // pred_fallthru
      _
    // Predicated region
    $region14: #{tpu_custom_call.1} parent=1 // pred_check
      _
    $region15: #{tpu_custom_call.1} parent=1 // pred_check_branch
      %27 = sbr.rel (0) target = $region17
    $region16: #{tpu_custom_call.1} parent=1 // pred_region
      _
    $region17: #{tpu_custom_call.1} parent=1 // pred_fallthru
      _
    // Predicated region
    $region18: #{tpu_custom_call.1} parent=1 // pred_check
      _
    $region19: #{tpu_custom_call.1} parent=1 // pred_check_branch
      %29 = sbr.rel (0) target = $region21
    $region20: #{tpu_custom_call.1} parent=1 // pred_region
      _
    $region21: #{tpu_custom_call.1} parent=1 // pred_fallthru
      _
    // Predicated region
    $region22: #{tpu_custom_call.1} parent=1 // pred_check
      _
    $region23: #{tpu_custom_call.1} parent=1 // pred_check_branch
      %31 = sbr.rel (0) target = $region25
    $region24: #{tpu_custom_call.1} parent=1 // pred_region
      %32 = dma.done [#allocation4], 16
    $region25: #{tpu_custom_call.1} parent=1 // pred_fallthru
      _
    %33 = sfence
    %s34 = sld [smem:[#allocation2]]
    %s35 = sld [smem:[#allocation2 + $0x1]]
    %s36 = sld [smem:[#allocation2 + $0x2]]
    %v37 = vld [vmem:[%s1] sm:$0xff]
    %v38 = vld [vmem:[%s2] sm:$0xff]
    %v39 = vld [vmem:[%s2 + $0x8] sm:$0xff]
    %v40 = vld [vmem:[%s2 + $0x10] sm:$0xff]
    %v41 = vld [vmem:[%s2 + $0x18] sm:$0xff]
    %v42 = vld [vmem:[%s2 + $0x20] sm:$0xff]
    %v43 = vld [vmem:[%s2 + $0x28] sm:$0xff]
    %v44 = vld [vmem:[%s2 + $0x30] sm:$0xff]
    %v45 = vld [vmem:[%s2 + $0x38] sm:$0xff]
    %v46 = vld [vmem:[%s2 + $0x40] sm:$0xff]
    %v47 = vld [vmem:[%s2 + $0x48] sm:$0xff]
    %v48 = vld [vmem:[%s2 + $0x50] sm:$0xff]
    %v49 = vld [vmem:[%s2 + $0x58] sm:$0xff]
    %vm50 = vcmask 785408
    %v52 = vsel %vm50, %v37, 0
    %54 = vmatprep.subr.mxu0 0.0
    %55 = vmatpush1.msra.mxu0 0.0
    %56 = vmatprep.subr.mxu0 0.0
    %57 = vmatpush1.msra.mxu0 0.0
    %58 = vmatprep.subr.mxu0 0.0
    %59 = vmatpush1.msra.mxu0 0.0
    %60 = vmatprep.subr.mxu0 0.0
    %61 = vmatpush1.msra.mxu0 0.0
    %62 = vmatprep.subr.mxu0 0.0
    %63 = vmatpush1.msra.mxu0 %v49
    %64 = vmatprep.subr.mxu0 0.0
    %65 = vmatpush1.msra.mxu0 %v48
    %66 = vmatprep.subr.mxu0 0.0
    %67 = vmatpush1.msra.mxu0 %v47
    %68 = vmatprep.subr.mxu0 0.0
    %69 = vmatpush1.msra.mxu0 %v46
    %70 = vmatprep.subr.mxu0 0.0
    %71 = vmatpush1.msra.mxu0 %v45
    %72 = vmatprep.subr.mxu0 0.0
    %73 = vmatpush1.msra.mxu0 %v44
    %74 = vmatprep.subr.mxu0 0.0
    %75 = vmatpush1.msra.mxu0 %v43
    %76 = vmatprep.subr.mxu0 0.0
    %77 = vmatpush1.msra.mxu0 %v42
    %78 = vmatprep.subr.mxu0 0.0
    %79 = vmatpush1.msra.mxu0 %v41
    %80 = vmatprep.subr.mxu0 0.0
    %81 = vmatpush1.msra.mxu0 %v40
    %82 = vmatprep.subr.mxu0 0.0
    %83 = vmatpush1.msra.mxu0 %v39
    %84 = vmatprep.subr.mxu0 0.0
    %85 = vmatpush1.msra.mxu0 %v38
    %86 = vmatprep.subr.mxu0 0.0
    %87 = vmatpush2.msra.mxu0 0.0
    %88 = vmatprep.subr.mxu0 0.0
    %89 = vmatpush2.msra.mxu0 0.0
    %90 = vmatprep.subr.mxu0 0.0
    %91 = vmatpush2.msra.mxu0 0.0
    %92 = vmatprep.subr.mxu0 0.0
    %93 = vmatpush2.msra.mxu0 0.0
    %94 = vmatprep.subr.mxu0 0.0
    %95 = vmatpush2.msra.mxu0 0.0
    %96 = vmatprep.subr.mxu0 0.0
    %97 = vmatpush2.msra.mxu0 0.0
    %98 = vmatprep.subr.mxu0 0.0
    %99 = vmatpush2.msra.mxu0 0.0
    %100 = vmatprep.subr.mxu0 0.0
    %101 = vmatpush2.msra.mxu0 0.0
    %102 = vmatprep.subr.mxu0 0.0
    %103 = vmatpush2.msra.mxu0 0.0
    %104 = vmatprep.subr.mxu0 0.0
    %105 = vmatpush2.msra.mxu0 0.0
    %106 = vmatprep.subr.mxu0 0.0
    %107 = vmatpush2.msra.mxu0 0.0
    %108 = vmatprep.subr.mxu0 0.0
    %109 = vmatpush2.msra.mxu0 0.0
    %110 = vmatprep.subr.mxu0 0.0
    %111 = vmatpush2.msra.mxu0 0.0
    %112 = vmatprep.subr.mxu0 0.0
    %113 = vmatpush2.msra.mxu0 0.0
    %114 = vmatprep.subr.mxu0 0.0
    %115 = vmatpush2.msra.mxu0 0.0
    %116 = vmatprep.subr.mxu0 0.0
    %117 = vmatpush2.msra.mxu0 0.0
    %118 = vmatprep.mubr.f32.mxu0 0.0
    %119 = vmatmul.mubr.f32.gmra.mxu0 %v52
    %v120 = vpop.f32.mrf.mxu0
    %v121 = vadd.f32 0.0, %v120
    %v122 = vpop.f32.mrf.mxu0
    %123 = vdwg.mxu0
    %v124 = vstv %s34
    %v125 = vadd.f32 %v121, %v124
    %v126 = vxor.u32 %v125, 2147483648
    %v127 = vmul.f32 %v126, 1.442695
    %v128 = vpow.pop %v127
    %v129 = vadd.f32 %v128, 1.0
    %v130 = vrcp.pop %v129
    %v131 = vmul.f32 1.0, %v130
    %v132 = vstv %s35
    %v133 = vadd.f32 %v121, %v132
    %v134 = vxor.u32 %v133, 2147483648
    %v135 = vmul.f32 %v134, 1.442695
    %v136 = vpow.pop %v135
    %v137 = vadd.f32 %v136, 1.0
    %v138 = vrcp.pop %v137
    %v139 = vmul.f32 1.0, %v138
    %v140 = vlaneseq
    %v141 = vand.u32 %v140, 127
    %vm142 = vcmp.lt.s32.totalorder %v141, 32
    %vm143 = vcmp.lt.s32.totalorder %v141, 64
    %145 = vset.pattern.permute.xlu0 0
    %146 = vperm.xlu0 %145, %v131
    %v147 = vpop.permute.xlu0 %146
    %150 = vset.pattern.permute.xlu0 1
    %151 = vperm.xlu0 %150, %v139
    %v152 = vpop.permute.xlu0 %151
    %v154 = vsel %vm143, %v147, %v152
    %v155 = vsel %vm142, 0.0, %v154
    %v156 = vld [vmem:[%s4] sm:$0x1]
    %v157 = vmul.f32 %v37, %v155
    %v158 = vld [vmem:[%s3] sm:$0xff]
    %v159 = vld [vmem:[%s3 + $0x8] sm:$0xff]
    %v160 = vld [vmem:[%s3 + $0x10] sm:$0xff]
    %v161 = vld [vmem:[%s3 + $0x18] sm:$0xff]
    %v162 = vld [vmem:[%s3 + $0x20] sm:$0xff]
    %v163 = vld [vmem:[%s3 + $0x28] sm:$0xff]
    %v164 = vld [vmem:[%s3 + $0x30] sm:$0xff]
    %v165 = vld [vmem:[%s3 + $0x38] sm:$0xff]
    %v166 = vld [vmem:[%s3 + $0x40] sm:$0xff]
    %v167 = vld [vmem:[%s3 + $0x48] sm:$0xff]
    %v168 = vld [vmem:[%s3 + $0x50] sm:$0xff]
    %v169 = vld [vmem:[%s3 + $0x58] sm:$0xff]
    %v170 = vlaneseq
    %v171 = vshrl.u32 %v170, 7
    %v172 = vsub.s32 0, %v171
    %v173 = vrot.slane %v156, %v172
    %v175 = vsel %vm50, %v157, 0
    %177 = vmatprep.subr.mxu0 0.0
    %178 = vmatpush1.msra.mxu0 0.0
    %179 = vmatprep.subr.mxu0 0.0
    %180 = vmatpush1.msra.mxu0 0.0
    %181 = vmatprep.subr.mxu0 0.0
    %182 = vmatpush1.msra.mxu0 0.0
    %183 = vmatprep.subr.mxu0 0.0
    %184 = vmatpush1.msra.mxu0 0.0
    %185 = vmatprep.subr.mxu0 0.0
    %186 = vmatpush1.msra.mxu0 %v169
    %187 = vmatprep.subr.mxu0 0.0
    %188 = vmatpush1.msra.mxu0 %v168
    %189 = vmatprep.subr.mxu0 0.0
    %190 = vmatpush1.msra.mxu0 %v167
    %191 = vmatprep.subr.mxu0 0.0
    %192 = vmatpush1.msra.mxu0 %v166
    %193 = vmatprep.subr.mxu0 0.0
    %194 = vmatpush1.msra.mxu0 %v165
    %195 = vmatprep.subr.mxu0 0.0
    %196 = vmatpush1.msra.mxu0 %v164
    %197 = vmatprep.subr.mxu0 0.0
    %198 = vmatpush1.msra.mxu0 %v163
    %199 = vmatprep.subr.mxu0 0.0
    %200 = vmatpush1.msra.mxu0 %v162
    %201 = vmatprep.subr.mxu0 0.0
    %202 = vmatpush1.msra.mxu0 %v161
    %203 = vmatprep.subr.mxu0 0.0
    %204 = vmatpush1.msra.mxu0 %v160
    %205 = vmatprep.subr.mxu0 0.0
    %206 = vmatpush1.msra.mxu0 %v159
    %207 = vmatprep.subr.mxu0 0.0
    %208 = vmatpush1.msra.mxu0 %v158
    %209 = vmatprep.subr.mxu0 0.0
    %210 = vmatpush2.msra.mxu0 0.0
    %211 = vmatprep.subr.mxu0 0.0
    %212 = vmatpush2.msra.mxu0 0.0
    %213 = vmatprep.subr.mxu0 0.0
    %214 = vmatpush2.msra.mxu0 0.0
    %215 = vmatprep.subr.mxu0 0.0
    %216 = vmatpush2.msra.mxu0 0.0
    %217 = vmatprep.subr.mxu0 0.0
    %218 = vmatpush2.msra.mxu0 0.0
    %219 = vmatprep.subr.mxu0 0.0
    %220 = vmatpush2.msra.mxu0 0.0
    %221 = vmatprep.subr.mxu0 0.0
    %222 = vmatpush2.msra.mxu0 0.0
    %223 = vmatprep.subr.mxu0 0.0
    %224 = vmatpush2.msra.mxu0 0.0
    %225 = vmatprep.subr.mxu0 0.0
    %226 = vmatpush2.msra.mxu0 0.0
    %227 = vmatprep.subr.mxu0 0.0
    %228 = vmatpush2.msra.mxu0 0.0
    %229 = vmatprep.subr.mxu0 0.0
    %230 = vmatpush2.msra.mxu0 0.0
    %231 = vmatprep.subr.mxu0 0.0
    %232 = vmatpush2.msra.mxu0 0.0
    %233 = vmatprep.subr.mxu0 0.0
    %234 = vmatpush2.msra.mxu0 0.0
    %235 = vmatprep.subr.mxu0 0.0
    %236 = vmatpush2.msra.mxu0 0.0
    %237 = vmatprep.subr.mxu0 0.0
    %238 = vmatpush2.msra.mxu0 0.0
    %239 = vmatprep.subr.mxu0 0.0
    %240 = vmatpush2.msra.mxu0 0.0
    %241 = vmatprep.mubr.f32.mxu0 0.0
    %242 = vmatmul.mubr.f32.gmra.mxu0 %v175
    %v243 = vpop.f32.mrf.mxu0
    %v244 = vadd.f32 %v173, %v243
    %v245 = vpop.f32.mrf.mxu0
    %246 = vdwg.mxu0
    %v247 = vmul.f32 %v37, %v37
    %vm248 = vcmask 261120
    %v249 = vsel %vm248, %v247, 0.0
    %250 = vadd.xlane.f32.xlu0 %v249
    %v251 = vpop.xlane.xlu0 %250
    %v252 = vrot.slane %v251, 4
    %v253 = vadd.f32 %v251, %v252
    %v254 = vrot.slane %v253, 2
    %v255 = vadd.f32 %v253, %v254
    %v256 = vrot.slane %v255, 1
    %v257 = vadd.f32 %v255, %v256
    %s258 = vtos %v257
    %v259 = vmul.f32 %v244, %v244
    %v260 = vsel %vm248, %v259, 0.0
    %261 = vadd.xlane.f32.xlu0 %v260
    %v262 = vpop.xlane.xlu0 %261
    %v263 = vrot.slane %v262, 4
    %v264 = vadd.f32 %v262, %v263
    %v265 = vrot.slane %v264, 2
    %v266 = vadd.f32 %v264, %v265
    %v267 = vrot.slane %v266, 1
    %v268 = vadd.f32 %v266, %v267
    %s269 = vtos %v268
    %v270 = vstv %s258
    %v271 = vrsqrt.pop %v270
    %v272 = vmul.f32 %v270, %v271
    %vm273 = vcmp.eq.f32.partialorder %v270, inf
    %v274 = vsel %vm273, %v270, %v272
    %vm275 = vcmp.eq.f32.partialorder %v270, 0.0
    %v276 = vand.u32 %v270, 2147483648
    %v277 = vsel %vm275, %v276, %v274
    %s278 = vtos %v277
    %s279 = smul.f32 %s36, %s278
    %v280 = vstv %s269
    %v281 = vrsqrt.pop %v280
    %s282 = vtos %v281
    %s283 = smul.f32 %s279, %s282
    %s284 = smin.f32 %s283, 1.0
    %v285 = vstv %s284
    %v286 = vmul.f32 %v285, %v244
    %v287 = vadd.f32 %v37, %v286
    %v288 = vsel %vm248, %v287, 0.0
    %289 = vadd.xlane.f32.xlu0 %v288
    %v290 = vpop.xlane.xlu0 %289
    %v291 = vrcp.pop 32.0
    %v292 = vmul.f32 %v290, %v291
    %v293 = vsub.f32 %v287, %v292
    %v294 = vmul.f32 %v293, %v293
    %v295 = vsel %vm248, %v294, 0.0
    %296 = vadd.xlane.f32.xlu0 %v295
    %v297 = vpop.xlane.xlu0 %296
    %v298 = vmul.f32 %v297, %v291
    %v299 = vld [vmem:[%s4 + $0x1] sm:$0x1]
    %v300 = vld [vmem:[%s4 + $0x2] sm:$0x1]
    %v301 = vadd.f32 %v298, 1e-05
    %v302 = vrsqrt.pop %v301
    %v303 = vmul.f32 %v293, %v302
    %v304 = vlaneseq
    %v305 = vshrl.u32 %v304, 7
    %v306 = vsub.s32 0, %v305
    %v307 = vrot.slane %v299, %v306
    %v308 = vmul.f32 %v303, %v307
    %v309 = vlaneseq
    %v310 = vshrl.u32 %v309, 7
    %v311 = vsub.s32 0, %v310
    %v312 = vrot.slane %v300, %v311
    %v313 = vadd.f32 %v308, %v312
    %314 = vst.msk [vmem:[#allocation5] sm:$0xff] %vm248, %v313
    // Predicated region
    $region26: #{tpu_custom_call.1} parent=1 // pred_check
      _
    $region27: #{tpu_custom_call.1} parent=1 // pred_check_branch
      %316 = sbr.rel (0) target = $region29
    $region28: #{tpu_custom_call.1} parent=1 // pred_region
      %s318 = ssub.s32 128, 128
      %319 = vsyncadd [#allocation3], %s318
      %s321 = sshll.u32 [#allocation5], 4
      %s322 = int_to_ptr.vmem [resolvable:$true] %s321
      %324 = dma.vmem_to_hbm [thread:$0]  %s322, 128, %s5, [#allocation3]
    $region29: #{tpu_custom_call.1} parent=1 // pred_fallthru
      _
    // Predicated region
    $region30: #{tpu_custom_call.1} parent=1 // pred_check
      _
    $region31: #{tpu_custom_call.1} parent=1 // pred_check_branch
      %326 = sbr.rel (0) target = $region33
    $region32: #{tpu_custom_call.1} parent=1 // pred_region
      %327 = dma.done [#allocation3], 128
    $region33: #{tpu_custom_call.1} parent=1 // pred_fallthru
      _
    %328 = vsyncpa [#allocation3], 1
    %329 = vsyncpa [#allocation4], 1

</llo_original>
